<compile_context>
chip_gen: v7x
topology: tpu7x:2x2x1
jax: 0.10.0
libtpu: 0.0.40
codegen_flags: <defaults>
</compile_context>

<pallas_src>
import functools

import jax
import jax.numpy as jnp
from jax.experimental import pallas as pl
from jax.experimental.pallas import tpu as pltpu

COMPUTE_DTYPE = jnp.bfloat16  # MXU input dtype; all accumulation stays f32.


# ----------------------------- Pallas kernel --------------------------------
def graphsage_fused_kernel(a_ref, x_ref, w1_ref, b1_ref, w2_ref, b2_ref,
                           o_ref, *, out_c):
    cdt = x_ref.dtype
    a = a_ref[...]                                              # [N, N]
    x = x_ref[...]                                              # [N, C_in]

    # ---- layer 1 (C_in < C_hid): aggregate first, then one fused transform.
    agg1 = jnp.dot(a, x, preferred_element_type=jnp.float32)    # [N, C_in]
    z1 = jnp.concatenate(
        [agg1, x.astype(jnp.float32)], axis=-1).astype(cdt)     # [N, 2*C_in]
    h = jnp.dot(z1, w1_ref[...],
                preferred_element_type=jnp.float32) + b1_ref[...]
    h = jnp.maximum(h, 0.0).astype(cdt)                         # ReLU [N, C_hid]

    # ---- layer 2 (C_hid > C_out): transform first, aggregate the small result.
    ts = jnp.dot(h, w2_ref[...],
                 preferred_element_type=jnp.float32)            # [N, 2*C_out]
    t = ts[:, :out_c].astype(cdt)                               # h @ W_l2
    s = ts[:, out_c:]                                           # h @ W_r2
    o_ref[...] = (jnp.dot(a, t, preferred_element_type=jnp.float32)
                  + s + b2_ref[...])


def graphsage_forward(params, x, a_norm):
    """Fused 2-layer GraphSAGE forward in a single pallas_call (eval mode)."""
    n, _ = x.shape
    w_l1, w_r1, b1 = params["conv1"]
    w_l2, w_r2, b2 = params["conv2"]
    out_c = w_l2.shape[1]
    cdt = COMPUTE_DTYPE

    # Stack each layer's two weight matrices so the kernel needs one matmul
    # per transform instead of two.
    w1 = jnp.concatenate([w_l1, w_r1], axis=0).astype(cdt)      # [2*C_in, C_hid]
    w2 = jnp.concatenate([w_l2, w_r2], axis=1).astype(cdt)      # [C_hid, 2*C_out]

    kernel = functools.partial(graphsage_fused_kernel, out_c=out_c)
    vmem = pl.BlockSpec(memory_space=pltpu.MemorySpace.VMEM)
    # TODO(synk): for large N, tile A_norm/X with BlockSpecs
    # (grid=(N//tm, C//tn, N//tk), reduction axis last, f32 VMEM accumulator
    # with pl.when init/finalize, dimension_semantics=("parallel","parallel",
    # "arbitrary")) and re-derive tile sizes per chip (v7x: 64 MiB VMEM).
    # Whole-problem-in-VMEM, single grid point is optimal at this toy size.
    return pl.pallas_call(
        kernel,
        out_shape=jax.ShapeDtypeStruct((n, out_c), jnp.float32),
        in_specs=[vmem] * 6,
        out_specs=vmem,
    )(a_norm.astype(cdt), x.astype(cdt), w1, b1, w2, b2)


# ------------------------------ glue (plain JAX) -----------------------------
def build_mean_adjacency(edge_index, num_nodes):
    """Dense row-normalized adjacency for mean aggregation.

    edge_index[0] = source nodes j, edge_index[1] = target nodes i
    (messages flow j -> i, aggregated at i), matching the PyG convention.
    Duplicate edges are counted in both the sum and the degree, exactly like
    PyG SAGEConv's mean aggregation on multigraphs.
    """
    src, dst = edge_index[0], edge_index[1]
    a = jnp.zeros((num_nodes, num_nodes), jnp.float32).at[dst, src].add(1.0)
    deg = jnp.sum(a, axis=1, keepdims=True)
    return a / jnp.maximum(deg, 1.0)


def init_linear(key, fan_in, fan_out, with_bias):
    """Deterministic uniform init (Kaiming-uniform-like bound, as nn.Linear)."""
    kw, kb = jax.random.split(key)
    bound = 1.0 / jnp.sqrt(jnp.float32(fan_in))
    w = jax.random.uniform(kw, (fan_in, fan_out), jnp.float32, -bound, bound)
    if with_bias:
        b = jax.random.uniform(kb, (1, fan_out), jnp.float32, -bound, bound)
    else:
        b = jnp.zeros((1, fan_out), jnp.float32)
    return w, b


def graphsage_reference(params, x, a_norm, compute_dtype):
    """Pure-JAX reference mirroring the kernel's math (same casts/order)."""
    w_l1, w_r1, b1 = params["conv1"]
    w_l2, w_r2, b2 = params["conv2"]
    a = a_norm.astype(compute_dtype)
    xc = x.astype(compute_dtype)
    agg1 = jnp.dot(a, xc, preferred_element_type=jnp.float32)
    h = (jnp.dot(agg1.astype(compute_dtype), w_l1.astype(compute_dtype),
                 preferred_element_type=jnp.float32)
         + jnp.dot(xc, w_r1.astype(compute_dtype),
                   preferred_element_type=jnp.float32) + b1)
    h = jnp.maximum(h, 0.0).astype(compute_dtype)
    t = jnp.dot(h, w_l2.astype(compute_dtype),
                preferred_element_type=jnp.float32).astype(compute_dtype)
    s = jnp.dot(h, w_r2.astype(compute_dtype),
                preferred_element_type=jnp.float32)
    return jnp.dot(a, t, preferred_element_type=jnp.float32) + s + b2


# ---------------------------------- main -------------------------------------
if __name__ == "__main__":
    N = 64            # number of graph nodes
    E = 256           # number of edges
    IN_C, HID_C, OUT_C = 16, 32, 8

    key = jax.random.PRNGKey(0)
    k_x, k_e, k_c1l, k_c1r, k_c2l, k_c2r = jax.random.split(key, 6)

    x = jax.random.normal(k_x, (N, IN_C), jnp.float32)
    edge_index = jax.random.randint(k_e, (2, E), 0, N, jnp.int32)

    # Parameters: SAGEConv(in, out) = lin_l (neighbors, bias) + lin_r (root, no bias)
    w_l1, b1 = init_linear(k_c1l, IN_C, HID_C, with_bias=True)
    w_r1, _ = init_linear(k_c1r, IN_C, HID_C, with_bias=False)
    w_l2, b2 = init_linear(k_c2l, HID_C, OUT_C, with_bias=True)
    w_r2, _ = init_linear(k_c2r, HID_C, OUT_C, with_bias=False)
    params = {"conv1": (w_l1, w_r1, b1), "conv2": (w_l2, w_r2, b2)}

    a_norm = build_mean_adjacency(edge_index, N)

    # F.dropout(p=0.4, training=False) in eval mode is the identity.
    # TODO(synk): training-mode dropout (stochastic masking) not implemented.
    out = graphsage_forward(params, x, a_norm)
    jax.block_until_ready(out)
    assert out.shape == (N, OUT_C)

    # Tight check vs. a reference that uses the same bf16 MXU inputs ...
    ref_bf16 = graphsage_reference(params, x, a_norm, COMPUTE_DTYPE)
    assert jnp.allclose(out, ref_bf16, atol=1e-3, rtol=1e-3)

    # ... plus a looser end-to-end sanity check vs. full f32 math.
    ref_h = jnp.maximum(a_norm @ x @ w_l1 + x @ w_r1 + b1, 0.0)
    ref_f32 = a_norm @ ref_h @ w_l2 + ref_h @ w_r2 + b2
    assert jnp.allclose(out, ref_f32, atol=5e-2, rtol=5e-2)

    print("KERNEL_OK")
</pallas_src>

<mosaic_0001>
module attributes {stable_mosaic.version = 11 : i64} {
  func.func @graphsage_fused_kernel(%arg0: memref<64x64xbf16, #tpu.memory_space<vmem>>, %arg1: memref<64x16xbf16, #tpu.memory_space<vmem>>, %arg2: memref<32x32xbf16, #tpu.memory_space<vmem>>, %arg3: memref<1x32xf32, #tpu.memory_space<vmem>>, %arg4: memref<32x16xbf16, #tpu.memory_space<vmem>>, %arg5: memref<1x8xf32, #tpu.memory_space<vmem>>, %arg6: memref<64x8xf32, #tpu.memory_space<vmem>>) attributes {dimension_semantics = [], scalar_prefetch = 0 : i64, scratch_operands = 0 : i64, tpu.core_type = #tpu.core_type<tc>} {
    %c0 = arith.constant 0 : index
    %c0_0 = arith.constant 0 : index
    %0 = vector.load %arg0[%c0, %c0_0] : memref<64x64xbf16, #tpu.memory_space<vmem>>, vector<64x64xbf16>
    %c0_1 = arith.constant 0 : index
    %c0_2 = arith.constant 0 : index
    %1 = vector.load %arg1[%c0_1, %c0_2] : memref<64x16xbf16, #tpu.memory_space<vmem>>, vector<64x16xbf16>
    %cst = arith.constant dense<0.000000e+00> : vector<64x16xf32>
    %2 = tpu.matmul %0, %1, %cst {dimension_numbers = #tpu.dot_dimension_numbers<[1], [0], [0], [1], [0, 0, 1, 1], [], []>} : vector<64x64xbf16>, vector<64x16xbf16>, vector<64x16xf32> -> vector<64x16xf32>
    %3 = arith.extf %1 : vector<64x16xbf16> to vector<64x16xf32>
    %4 = tpu.concatenate %2, %3 in 1 : vector<64x16xf32>, vector<64x16xf32> -> vector<64x32xf32>
    %5 = arith.truncf %4 : vector<64x32xf32> to vector<64x32xbf16>
    %c0_3 = arith.constant 0 : index
    %c0_4 = arith.constant 0 : index
    %6 = vector.load %arg2[%c0_3, %c0_4] : memref<32x32xbf16, #tpu.memory_space<vmem>>, vector<32x32xbf16>
    %cst_5 = arith.constant dense<0.000000e+00> : vector<64x32xf32>
    %7 = tpu.matmul %5, %6, %cst_5 {dimension_numbers = #tpu.dot_dimension_numbers<[1], [0], [0], [1], [0, 0, 1, 1], [], []>} : vector<64x32xbf16>, vector<32x32xbf16>, vector<64x32xf32> -> vector<64x32xf32>
    %c0_6 = arith.constant 0 : index
    %c0_7 = arith.constant 0 : index
    %8 = vector.load %arg3[%c0_6, %c0_7] : memref<1x32xf32, #tpu.memory_space<vmem>>, vector<1x32xf32>
    %9 = vector.broadcast %8 : vector<1x32xf32> to vector<64x32xf32>
    %10 = arith.addf %7, %9 : vector<64x32xf32>
    %cst_8 = arith.constant 0.000000e+00 : f32
    %11 = vector.broadcast %cst_8 : f32 to vector<64x32xf32>
    %12 = arith.maximumf %10, %11 : vector<64x32xf32>
    %13 = arith.truncf %12 : vector<64x32xf32> to vector<64x32xbf16>
    %c0_9 = arith.constant 0 : index
    %c0_10 = arith.constant 0 : index
    %14 = vector.load %arg4[%c0_9, %c0_10] : memref<32x16xbf16, #tpu.memory_space<vmem>>, vector<32x16xbf16>
    %cst_11 = arith.constant dense<0.000000e+00> : vector<64x16xf32>
    %15 = tpu.matmul %13, %14, %cst_11 {dimension_numbers = #tpu.dot_dimension_numbers<[1], [0], [0], [1], [0, 0, 1, 1], [], []>} : vector<64x32xbf16>, vector<32x16xbf16>, vector<64x16xf32> -> vector<64x16xf32>
    %16 = vector.extract_strided_slice %15 {offsets = [0, 0], sizes = [64, 8], strides = [1, 1]} : vector<64x16xf32> to vector<64x8xf32>
    %17 = arith.truncf %16 : vector<64x8xf32> to vector<64x8xbf16>
    %18 = vector.extract_strided_slice %15 {offsets = [0, 8], sizes = [64, 8], strides = [1, 1]} : vector<64x16xf32> to vector<64x8xf32>
    %cst_12 = arith.constant dense<0.000000e+00> : vector<64x8xf32>
    %19 = tpu.matmul %0, %17, %cst_12 {dimension_numbers = #tpu.dot_dimension_numbers<[1], [0], [0], [1], [0, 0, 1, 1], [], []>} : vector<64x64xbf16>, vector<64x8xbf16>, vector<64x8xf32> -> vector<64x8xf32>
    %20 = arith.addf %19, %18 : vector<64x8xf32>
    %c0_13 = arith.constant 0 : index
    %c0_14 = arith.constant 0 : index
    %21 = vector.load %arg5[%c0_13, %c0_14] : memref<1x8xf32, #tpu.memory_space<vmem>>, vector<1x8xf32>
    %22 = vector.broadcast %21 : vector<1x8xf32> to vector<64x8xf32>
    %23 = arith.addf %20, %22 : vector<64x8xf32>
    %c0_15 = arith.constant 0 : index
    %c0_16 = arith.constant 0 : index
    %24 = vector.load %arg6[%c0_15, %c0_16] : memref<64x8xf32, #tpu.memory_space<vmem>>, vector<64x8xf32>
    tpu.vector_store %arg6[%c0_15, %c0_16], %23 {strides = array<i32>} : memref<64x8xf32, #tpu.memory_space<vmem>>, vector<64x8xf32>,
    return
  }
}

</mosaic_0001>

<llo_original>
// kernel: tpu_custom_call.1
$region0: #{tpu_custom_call.1}
  #allocation0 [shape = 'u32[]', space=smem, size = 0x4, offset = 0x4, fixed_abs, tag = 'smem constant byte address 0x4 - core index']
  #allocation1 [shape = 'u32[144,128]{1,0:T(1,128)}', space=vmem, size = 0x12000, scoped, tag = 'internal scratch']
  %s0 = inlined_call_operand.vmem [shape: bf16[64,64], index: 0, kind: input, shape index: {}]
  %s1 = inlined_call_operand.vmem [shape: bf16[64,16], index: 1, kind: input, shape index: {}]
  %s2 = inlined_call_operand.vmem [shape: bf16[32,32], index: 2, kind: input, shape index: {}]
  %s3 = inlined_call_operand.vmem [shape: f32[1,32], index: 3, kind: input, shape index: {}]
  %s4 = inlined_call_operand.vmem [shape: bf16[32,16], index: 4, kind: input, shape index: {}]
  %s5 = inlined_call_operand.vmem [shape: f32[1,8], index: 5, kind: input, shape index: {}]
  %s6 = inlined_call_operand.vmem [shape: f32[64,8], index: 6, kind: output, shape index: {}]
  %s7 = sld [smem:[#allocation0]]
  $region34: #{tpu_custom_call.1} parent=0
    _
  %s9 = ssub.s32 1, %s7
  %s10 = scalar_select 0, %s9, %s7
  // Predicated region
  $region2: #{tpu_custom_call.1} parent=0 // pred_check
    _
  $region3: #{tpu_custom_call.1} parent=0 // pred_check_branch
    %12 = sbr.rel (0) target = $region5
  $region4: #{tpu_custom_call.1} parent=0 // pred_region
    _
  $region5: #{tpu_custom_call.1} parent=0 // pred_fallthru
    _
  // Predicated region
  $region6: #{tpu_custom_call.1} parent=0 // pred_check
    _
  $region7: #{tpu_custom_call.1} parent=0 // pred_check_branch
    %14 = sbr.rel (0) target = $region9
  $region8: #{tpu_custom_call.1} parent=0 // pred_region
    _
  $region9: #{tpu_custom_call.1} parent=0 // pred_fallthru
    _
  // Predicated region
  $region10: #{tpu_custom_call.1} parent=0 // pred_check
    _
  $region11: #{tpu_custom_call.1} parent=0 // pred_check_branch
    %16 = sbr.rel (0) target = $region13
  $region12: #{tpu_custom_call.1} parent=0 // pred_region
    _
  $region13: #{tpu_custom_call.1} parent=0 // pred_fallthru
    _
  // Predicated region
  $region14: #{tpu_custom_call.1} parent=0 // pred_check
    _
  $region15: #{tpu_custom_call.1} parent=0 // pred_check_branch
    %18 = sbr.rel (0) target = $region17
  $region16: #{tpu_custom_call.1} parent=0 // pred_region
    _
  $region17: #{tpu_custom_call.1} parent=0 // pred_fallthru
    _
  // Predicated region
  $region18: #{tpu_custom_call.1} parent=0 // pred_check
    _
  $region19: #{tpu_custom_call.1} parent=0 // pred_check_branch
    %20 = sbr.rel (0) target = $region21
  $region20: #{tpu_custom_call.1} parent=0 // pred_region
    _
  $region21: #{tpu_custom_call.1} parent=0 // pred_fallthru
    _
  // Predicated region
  $region22: #{tpu_custom_call.1} parent=0 // pred_check
    _
  $region23: #{tpu_custom_call.1} parent=0 // pred_check_branch
    %22 = sbr.rel (0) target = $region25
  $region24: #{tpu_custom_call.1} parent=0 // pred_region
    _
  $region25: #{tpu_custom_call.1} parent=0 // pred_fallthru
    _
  %v24 = vld [vmem:[%s0] sm:$0xf]
  %v25 = vld [vmem:[%s0 + $0x4] sm:$0xf]
  %v26 = vld [vmem:[%s0 + $0x8] sm:$0xf]
  %v27 = vld [vmem:[%s0 + $0xc] sm:$0xf]
  %v28 = vld [vmem:[%s0 + $0x10] sm:$0xf]
  %v29 = vld [vmem:[%s0 + $0x14] sm:$0xf]
  %v30 = vld [vmem:[%s0 + $0x18] sm:$0xf]
  %v31 = vld [vmem:[%s0 + $0x1c] sm:$0xf]
  %v32 = vld [vmem:[%s1] sm:$0xf]
  %v33 = vld [vmem:[%s1 + $0x4] sm:$0xf]
  %v34 = vld [vmem:[%s1 + $0x8] sm:$0xf]
  %v35 = vld [vmem:[%s1 + $0xc] sm:$0xf]
  %v36 = vld [vmem:[%s1 + $0x10] sm:$0xf]
  %v37 = vld [vmem:[%s1 + $0x14] sm:$0xf]
  %v38 = vld [vmem:[%s1 + $0x18] sm:$0xf]
  %v39 = vld [vmem:[%s1 + $0x1c] sm:$0xf]
  %v48 = vunpack.c.l.b16 %v24
  %v49 = vunpack.c.l.b16 %v25
  %v50 = vunpack.c.l.b16 %v26
  %v51 = vunpack.c.l.b16 %v27
  %v52 = vunpack.c.l.b16 %v28
  %v53 = vunpack.c.l.b16 %v29
  %v54 = vunpack.c.l.b16 %v30
  %v55 = vunpack.c.l.b16 %v31
  %v56 = vpack.c.b16 %v49, %v48
  %v57 = vpack.c.b16 %v51, %v50
  %v58 = vpack.c.b16 %v53, %v52
  %v59 = vpack.c.b16 %v55, %v54
  %v68 = vunpack.c.l.b16 %v32
  %v69 = vunpack.c.l.b16 %v33
  %v70 = vunpack.c.l.b16 %v34
  %v71 = vunpack.c.l.b16 %v35
  %v72 = vunpack.c.l.b16 %v36
  %v73 = vunpack.c.l.b16 %v37
  %v74 = vunpack.c.l.b16 %v38
  %v75 = vunpack.c.l.b16 %v39
  %v76 = vpack.c.b16 %v69, %v68
  %v77 = vpack.c.b16 %v71, %v70
  %v78 = vpack.c.b16 %v73, %v72
  %v79 = vpack.c.b16 %v75, %v74
  %vm84 = vcmask 523264
  %v86 = vsel %vm84, %v56, 0
  %v89 = vsel %vm84, %v57, 0
  %v92 = vsel %vm84, %v58, 0
  %v95 = vsel %vm84, %v59, 0
  %97 = vmatprep.subr.bf16.mxu0 0
  %98 = vmatpush1.bf16.msra.mxu0 %v76
  %99 = vmatprep.subr.bf16.mxu0 0
  %100 = vmatpush1.bf16.msra.mxu0 %v77
  %101 = vmatprep.subr.bf16.mxu0 0
  %102 = vmatpush1.bf16.msra.mxu0 %v78
  %103 = vmatprep.subr.bf16.mxu0 0
  %104 = vmatpush1.bf16.msra.mxu0 %v79
  %105 = vmatprep.subr.bf16.mxu0 0
  %106 = vmatpush1.bf16.msra.mxu0 0
  %107 = vmatprep.subr.bf16.mxu0 0
  %108 = vmatpush1.bf16.msra.mxu0 0
  %109 = vmatprep.subr.bf16.mxu0 0
  %110 = vmatpush1.bf16.msra.mxu0 0
  %111 = vmatprep.subr.bf16.mxu0 0
  %112 = vmatpush1.bf16.msra.mxu0 0
  %113 = vmatprep.subr.bf16.mxu0 0
  %114 = vmatpush1.bf16.msra.mxu0 0
  %115 = vmatprep.subr.bf16.mxu0 0
  %116 = vmatpush1.bf16.msra.mxu0 0
  %117 = vmatprep.subr.bf16.mxu0 0
  %118 = vmatpush1.bf16.msra.mxu0 0
  %119 = vmatprep.subr.bf16.mxu0 0
  %120 = vmatpush1.bf16.msra.mxu0 0
  %121 = vmatprep.subr.bf16.mxu0 0
  %122 = vmatpush1.bf16.msra.mxu0 0
  %123 = vmatprep.subr.bf16.mxu0 0
  %124 = vmatpush1.bf16.msra.mxu0 0
  %125 = vmatprep.subr.bf16.mxu0 0
  %126 = vmatpush1.bf16.msra.mxu0 0
  %127 = vmatprep.subr.bf16.mxu0 0
  %128 = vmatpush1.bf16.msra.mxu0 0
  %129 = vmatprep.mubr.bf16.mxu0 0
  %130 = vmatmul.mubr.bf16.gmra.mrb[0].mxu0 %v86
  %v131 = vpop.f32.mrb[0].mxu0
  %v132 = vadd.f32 0.0, %v131
  %v133 = vpop.f32.mrb[0].mxu0
  %v134 = vpop.f32.mrb[0].mxu0
  %v135 = vadd.f32 0.0, %v134
  %v136 = vpop.f32.mrb[0].mxu0
  %137 = vmatprep.mubr.bf16.mxu0 0
  %138 = vmatmul.mubr.bf16.gmra.mrb[0].mxu0 %v89
  %v139 = vpop.f32.mrb[0].mxu0
  %v140 = vadd.f32 0.0, %v139
  %v141 = vpop.f32.mrb[0].mxu0
  %v142 = vpop.f32.mrb[0].mxu0
  %v143 = vadd.f32 0.0, %v142
  %v144 = vpop.f32.mrb[0].mxu0
  %145 = vmatprep.mubr.bf16.mxu0 0
  %146 = vmatmul.mubr.bf16.gmra.mrb[0].mxu0 %v92
  %v147 = vpop.f32.mrb[0].mxu0
  %v148 = vadd.f32 0.0, %v147
  %v149 = vpop.f32.mrb[0].mxu0
  %v150 = vpop.f32.mrb[0].mxu0
  %v151 = vadd.f32 0.0, %v150
  %v152 = vpop.f32.mrb[0].mxu0
  %153 = vmatprep.mubr.bf16.mxu0 0
  %154 = vmatmul.mubr.bf16.gmra.mrb[0].mxu0 %v95
  %v155 = vpop.f32.mrb[0].mxu0
  %v156 = vadd.f32 0.0, %v155
  %v157 = vpop.f32.mrb[0].mxu0
  %v158 = vpop.f32.mrb[0].mxu0
  %v159 = vadd.f32 0.0, %v158
  %v160 = vpop.f32.mrb[0].mxu0
  %161 = vdwg.mxu0
  %v162 = vunpack.c.l.bf16 %v32
  %v163 = vunpack.c.l.bf16 %v33
  %v164 = vunpack.c.l.bf16 %v34
  %v165 = vunpack.c.l.bf16 %v35
  %v166 = vunpack.c.l.bf16 %v36
  %v167 = vunpack.c.l.bf16 %v37
  %v168 = vunpack.c.l.bf16 %v38
  %v169 = vunpack.c.l.bf16 %v39
  %178 = vrot.lane.b32.xlu0 %v162, 16
  %v179 = vpop.permute.xlu0 %178
  %180 = vrot.lane.b32.xlu0 %v163, 16
  %v181 = vpop.permute.xlu0 %180
  %182 = vrot.lane.b32.xlu0 %v164, 16
  %v183 = vpop.permute.xlu0 %182
  %184 = vrot.lane.b32.xlu0 %v165, 16
  %v185 = vpop.permute.xlu0 %184
  %186 = vrot.lane.b32.xlu0 %v166, 16
  %v187 = vpop.permute.xlu0 %186
  %188 = vrot.lane.b32.xlu0 %v167, 16
  %v189 = vpop.permute.xlu0 %188
  %190 = vrot.lane.b32.xlu0 %v168, 16
  %v191 = vpop.permute.xlu0 %190
  %192 = vrot.lane.b32.xlu0 %v169, 16
  %v193 = vpop.permute.xlu0 %192
  %vm202 = vcmask 130048
  %v203 = vsel %vm202, %v132, %v179
  %v204 = vsel %vm202, %v135, %v181
  %v205 = vsel %vm202, %v140, %v183
  %v206 = vsel %vm202, %v143, %v185
  %v207 = vsel %vm202, %v148, %v187
  %v208 = vsel %vm202, %v151, %v189
  %v209 = vsel %vm202, %v156, %v191
  %v210 = vsel %vm202, %v159, %v193
  %v211 = vpack.c.bf16 %v204, %v203
  %v212 = vpack.c.bf16 %v206, %v205
  %v213 = vpack.c.bf16 %v208, %v207
  %v214 = vpack.c.bf16 %v210, %v209
  %v215 = vld [vmem:[%s2] sm:$0xf]
  %v216 = vld [vmem:[%s2 + $0x4] sm:$0xf]
  %v217 = vld [vmem:[%s2 + $0x8] sm:$0xf]
  %v218 = vld [vmem:[%s2 + $0xc] sm:$0xf]
  %v219 = vld [vmem:[%s3] sm:$0x1]
  %v221 = vlaneseq
  %v222 = vshrl.u32 %v221, 7
  %v223 = vsub.s32 0, %v222
  %v224 = vrot.slane %v219, %v223
  %v230 = vunpack.c.l.b16 %v215
  %v231 = vunpack.c.l.b16 %v216
  %v232 = vunpack.c.l.b16 %v217
  %v233 = vunpack.c.l.b16 %v218
  %v234 = vpack.c.b16 %v231, %v230
  %v235 = vpack.c.b16 %v233, %v232
  %vm238 = vcmask 261120
  %v240 = vsel %vm238, %v211, 0
  %v243 = vsel %vm238, %v212, 0
  %v246 = vsel %vm238, %v213, 0
  %v249 = vsel %vm238, %v214, 0
  %251 = vmatprep.subr.bf16.mxu0 0
  %252 = vmatpush1.bf16.msra.mxu0 %v234
  %253 = vmatprep.subr.bf16.mxu0 0
  %254 = vmatpush1.bf16.msra.mxu0 %v235
  %255 = vmatprep.subr.bf16.mxu0 0
  %256 = vmatpush1.bf16.msra.mxu0 0
  %257 = vmatprep.subr.bf16.mxu0 0
  %258 = vmatpush1.bf16.msra.mxu0 0
  %259 = vmatprep.subr.bf16.mxu0 0
  %260 = vmatpush1.bf16.msra.mxu0 0
  %261 = vmatprep.subr.bf16.mxu0 0
  %262 = vmatpush1.bf16.msra.mxu0 0
  %263 = vmatprep.subr.bf16.mxu0 0
  %264 = vmatpush1.bf16.msra.mxu0 0
  %265 = vmatprep.subr.bf16.mxu0 0
  %266 = vmatpush1.bf16.msra.mxu0 0
  %267 = vmatprep.subr.bf16.mxu0 0
  %268 = vmatpush1.bf16.msra.mxu0 0
  %269 = vmatprep.subr.bf16.mxu0 0
  %270 = vmatpush1.bf16.msra.mxu0 0
  %271 = vmatprep.subr.bf16.mxu0 0
  %272 = vmatpush1.bf16.msra.mxu0 0
  %273 = vmatprep.subr.bf16.mxu0 0
  %274 = vmatpush1.bf16.msra.mxu0 0
  %275 = vmatprep.subr.bf16.mxu0 0
  %276 = vmatpush1.bf16.msra.mxu0 0
  %277 = vmatprep.subr.bf16.mxu0 0
  %278 = vmatpush1.bf16.msra.mxu0 0
  %279 = vmatprep.subr.bf16.mxu0 0
  %280 = vmatpush1.bf16.msra.mxu0 0
  %281 = vmatprep.subr.bf16.mxu0 0
  %282 = vmatpush1.bf16.msra.mxu0 0
  %283 = vmatprep.mubr.bf16.mxu0 0
  %284 = vmatmul.mubr.bf16.gmra.mrb[0].mxu0 %v240
  %v285 = vpop.f32.mrb[0].mxu0
  %v286 = vadd.f32 %v224, %v285
  %v287 = vpop.f32.mrb[0].mxu0
  %v288 = vpop.f32.mrb[0].mxu0
  %v289 = vadd.f32 %v224, %v288
  %v290 = vpop.f32.mrb[0].mxu0
  %291 = vmatprep.mubr.bf16.mxu0 0
  %292 = vmatmul.mubr.bf16.gmra.mrb[0].mxu0 %v243
  %v293 = vpop.f32.mrb[0].mxu0
  %v294 = vadd.f32 %v224, %v293
  %v295 = vpop.f32.mrb[0].mxu0
  %v296 = vpop.f32.mrb[0].mxu0
  %v297 = vadd.f32 %v224, %v296
  %v298 = vpop.f32.mrb[0].mxu0
  %299 = vmatprep.mubr.bf16.mxu0 0
  %300 = vmatmul.mubr.bf16.gmra.mrb[0].mxu0 %v246
  %v301 = vpop.f32.mrb[0].mxu0
  %v302 = vadd.f32 %v224, %v301
  %v303 = vpop.f32.mrb[0].mxu0
  %v304 = vpop.f32.mrb[0].mxu0
  %v305 = vadd.f32 %v224, %v304
  %v306 = vpop.f32.mrb[0].mxu0
  %307 = vmatprep.mubr.bf16.mxu0 0
  %308 = vmatmul.mubr.bf16.gmra.mrb[0].mxu0 %v249
  %v309 = vpop.f32.mrb[0].mxu0
  %v310 = vadd.f32 %v224, %v309
  %v311 = vpop.f32.mrb[0].mxu0
  %v312 = vpop.f32.mrb[0].mxu0
  %v313 = vadd.f32 %v224, %v312
  %v314 = vpop.f32.mrb[0].mxu0
  %315 = vdwg.mxu0
  %v316 = vmax.f32 %v286, 0.0
  %v317 = vmax.f32 %v289, 0.0
  %v318 = vmax.f32 %v294, 0.0
  %v319 = vmax.f32 %v297, 0.0
  %v320 = vmax.f32 %v302, 0.0
  %v321 = vmax.f32 %v305, 0.0
  %v322 = vmax.f32 %v310, 0.0
  %v323 = vmax.f32 %v313, 0.0
  %v324 = vpack.c.bf16 %v317, %v316
  %v325 = vpack.c.bf16 %v319, %v318
  %v326 = vpack.c.bf16 %v321, %v320
  %v327 = vpack.c.bf16 %v323, %v322
  %v328 = vld [vmem:[%s4] sm:$0xf]
  %v329 = vld [vmem:[%s4 + $0x4] sm:$0xf]
  %v330 = vld [vmem:[%s4 + $0x8] sm:$0xf]
  %v331 = vld [vmem:[%s4 + $0xc] sm:$0xf]
  %v336 = vunpack.c.l.b16 %v328
  %v337 = vunpack.c.l.b16 %v329
  %v338 = vunpack.c.l.b16 %v330
  %v339 = vunpack.c.l.b16 %v331
  %v340 = vpack.c.b16 %v337, %v336
  %v341 = vpack.c.b16 %v339, %v338
  %v345 = vsel %vm238, %v324, 0
  %v348 = vsel %vm238, %v325, 0
  %v351 = vsel %vm238, %v326, 0
  %v354 = vsel %vm238, %v327, 0
  %356 = vmatprep.subr.bf16.mxu0 0
  %357 = vmatpush1.bf16.msra.mxu0 %v340
  %358 = vmatprep.subr.bf16.mxu0 0
  %359 = vmatpush1.bf16.msra.mxu0 %v341
  %360 = vmatprep.subr.bf16.mxu0 0
  %361 = vmatpush1.bf16.msra.mxu0 0
  %362 = vmatprep.subr.bf16.mxu0 0
  %363 = vmatpush1.bf16.msra.mxu0 0
  %364 = vmatprep.subr.bf16.mxu0 0
  %365 = vmatpush1.bf16.msra.mxu0 0
  %366 = vmatprep.subr.bf16.mxu0 0
  %367 = vmatpush1.bf16.msra.mxu0 0
  %368 = vmatprep.subr.bf16.mxu0 0
  %369 = vmatpush1.bf16.msra.mxu0 0
  %370 = vmatprep.subr.bf16.mxu0 0
  %371 = vmatpush1.bf16.msra.mxu0 0
  %372 = vmatprep.subr.bf16.mxu0 0
  %373 = vmatpush1.bf16.msra.mxu0 0
  %374 = vmatprep.subr.bf16.mxu0 0
  %375 = vmatpush1.bf16.msra.mxu0 0
  %376 = vmatprep.subr.bf16.mxu0 0
  %377 = vmatpush1.bf16.msra.mxu0 0
  %378 = vmatprep.subr.bf16.mxu0 0
  %379 = vmatpush1.bf16.msra.mxu0 0
  %380 = vmatprep.subr.bf16.mxu0 0
  %381 = vmatpush1.bf16.msra.mxu0 0
  %382 = vmatprep.subr.bf16.mxu0 0
  %383 = vmatpush1.bf16.msra.mxu0 0
  %384 = vmatprep.subr.bf16.mxu0 0
  %385 = vmatpush1.bf16.msra.mxu0 0
  %386 = vmatprep.subr.bf16.mxu0 0
  %387 = vmatpush1.bf16.msra.mxu0 0
  %388 = vmatprep.mubr.bf16.mxu0 0
  %389 = vmatmul.mubr.bf16.gmra.mrb[0].mxu0 %v345
  %v390 = vpop.f32.mrb[0].mxu0
  %v391 = vadd.f32 0.0, %v390
  %v392 = vpop.f32.mrb[0].mxu0
  %v393 = vpop.f32.mrb[0].mxu0
  %v394 = vadd.f32 0.0, %v393
  %v395 = vpop.f32.mrb[0].mxu0
  %396 = vmatprep.mubr.bf16.mxu0 0
  %397 = vmatmul.mubr.bf16.gmra.mrb[0].mxu0 %v348
  %v398 = vpop.f32.mrb[0].mxu0
  %v399 = vadd.f32 0.0, %v398
  %v400 = vpop.f32.mrb[0].mxu0
  %v401 = vpop.f32.mrb[0].mxu0
  %v402 = vadd.f32 0.0, %v401
  %v403 = vpop.f32.mrb[0].mxu0
  %404 = vmatprep.mubr.bf16.mxu0 0
  %405 = vmatmul.mubr.bf16.gmra.mrb[0].mxu0 %v351
  %v406 = vpop.f32.mrb[0].mxu0
  %v407 = vadd.f32 0.0, %v406
  %v408 = vpop.f32.mrb[0].mxu0
  %v409 = vpop.f32.mrb[0].mxu0
  %v410 = vadd.f32 0.0, %v409
  %v411 = vpop.f32.mrb[0].mxu0
  %412 = vmatprep.mubr.bf16.mxu0 0
  %413 = vmatmul.mubr.bf16.gmra.mrb[0].mxu0 %v354
  %v414 = vpop.f32.mrb[0].mxu0
  %v415 = vadd.f32 0.0, %v414
  %v416 = vpop.f32.mrb[0].mxu0
  %v417 = vpop.f32.mrb[0].mxu0
  %v418 = vadd.f32 0.0, %v417
  %v419 = vpop.f32.mrb[0].mxu0
  %420 = vdwg.mxu0
  %v421 = vpack.c.bf16 %v394, %v391
  %v422 = vpack.c.bf16 %v402, %v399
  %v423 = vpack.c.bf16 %v410, %v407
  %v424 = vpack.c.bf16 %v418, %v415
  %433 = vrot.lane.b32.xlu0 %v391, 120
  %v434 = vpop.permute.xlu0 %433
  %435 = vrot.lane.b32.xlu0 %v394, 120
  %v436 = vpop.permute.xlu0 %435
  %437 = vrot.lane.b32.xlu0 %v399, 120
  %v438 = vpop.permute.xlu0 %437
  %439 = vrot.lane.b32.xlu0 %v402, 120
  %v440 = vpop.permute.xlu0 %439
  %441 = vrot.lane.b32.xlu0 %v407, 120
  %v442 = vpop.permute.xlu0 %441
  %443 = vrot.lane.b32.xlu0 %v410, 120
  %v444 = vpop.permute.xlu0 %443
  %445 = vrot.lane.b32.xlu0 %v415, 120
  %v446 = vpop.permute.xlu0 %445
  %447 = vrot.lane.b32.xlu0 %v418, 120
  %v448 = vpop.permute.xlu0 %447
  %457 = vmatprep.subr.bf16.mxu0 0
  %458 = vmatpush1.bf16.msra.mxu0 %v421
  %459 = vmatprep.subr.bf16.mxu0 0
  %460 = vmatpush1.bf16.msra.mxu0 %v422
  %461 = vmatprep.subr.bf16.mxu0 0
  %462 = vmatpush1.bf16.msra.mxu0 %v423
  %463 = vmatprep.subr.bf16.mxu0 0
  %464 = vmatpush1.bf16.msra.mxu0 %v424
  %465 = vmatprep.subr.bf16.mxu0 0
  %466 = vmatpush1.bf16.msra.mxu0 0
  %467 = vmatprep.subr.bf16.mxu0 0
  %468 = vmatpush1.bf16.msra.mxu0 0
  %469 = vmatprep.subr.bf16.mxu0 0
  %470 = vmatpush1.bf16.msra.mxu0 0
  %471 = vmatprep.subr.bf16.mxu0 0
  %472 = vmatpush1.bf16.msra.mxu0 0
  %473 = vmatprep.subr.bf16.mxu0 0
  %474 = vmatpush1.bf16.msra.mxu0 0
  %475 = vmatprep.subr.bf16.mxu0 0
  %476 = vmatpush1.bf16.msra.mxu0 0
  %477 = vmatprep.subr.bf16.mxu0 0
  %478 = vmatpush1.bf16.msra.mxu0 0
  %479 = vmatprep.subr.bf16.mxu0 0
  %480 = vmatpush1.bf16.msra.mxu0 0
  %481 = vmatprep.subr.bf16.mxu0 0
  %482 = vmatpush1.bf16.msra.mxu0 0
  %483 = vmatprep.subr.bf16.mxu0 0
  %484 = vmatpush1.bf16.msra.mxu0 0
  %485 = vmatprep.subr.bf16.mxu0 0
  %486 = vmatpush1.bf16.msra.mxu0 0
  %487 = vmatprep.subr.bf16.mxu0 0
  %488 = vmatpush1.bf16.msra.mxu0 0
  %489 = vmatprep.mubr.bf16.mxu0 0
  %490 = vmatmul.mubr.bf16.gmra.mrb[0].mxu0 %v86
  %v491 = vpop.f32.mrb[0].mxu0
  %v492 = vadd.f32 %v434, %v491
  %v493 = vpop.f32.mrb[0].mxu0
  %v494 = vpop.f32.mrb[0].mxu0
  %v495 = vadd.f32 %v436, %v494
  %v496 = vpop.f32.mrb[0].mxu0
  %497 = vmatprep.mubr.bf16.mxu0 0
  %498 = vmatmul.mubr.bf16.gmra.mrb[0].mxu0 %v89
  %v499 = vpop.f32.mrb[0].mxu0
  %v500 = vadd.f32 %v438, %v499
  %v501 = vpop.f32.mrb[0].mxu0
  %v502 = vpop.f32.mrb[0].mxu0
  %v503 = vadd.f32 %v440, %v502
  %v504 = vpop.f32.mrb[0].mxu0
  %505 = vmatprep.mubr.bf16.mxu0 0
  %506 = vmatmul.mubr.bf16.gmra.mrb[0].mxu0 %v92
  %v507 = vpop.f32.mrb[0].mxu0
  %v508 = vadd.f32 %v442, %v507
  %v509 = vpop.f32.mrb[0].mxu0
  %v510 = vpop.f32.mrb[0].mxu0
  %v511 = vadd.f32 %v444, %v510
  %v512 = vpop.f32.mrb[0].mxu0
  %513 = vmatprep.mubr.bf16.mxu0 0
  %514 = vmatmul.mubr.bf16.gmra.mrb[0].mxu0 %v95
  %v515 = vpop.f32.mrb[0].mxu0
  %v516 = vadd.f32 %v446, %v515
  %v517 = vpop.f32.mrb[0].mxu0
  %v518 = vpop.f32.mrb[0].mxu0
  %v519 = vadd.f32 %v448, %v518
  %v520 = vpop.f32.mrb[0].mxu0
  %521 = vdwg.mxu0
  %v522 = vld [vmem:[%s5] sm:$0x1]
  %v524 = vlaneseq
  %v525 = vshrl.u32 %v524, 7
  %v526 = vsub.s32 0, %v525
  %v527 = vrot.slane %v522, %v526
  %v529 = vadd.f32 %v492, %v527
  %v530 = vadd.f32 %v495, %v527
  %v531 = vadd.f32 %v500, %v527
  %v532 = vadd.f32 %v503, %v527
  %v533 = vadd.f32 %v508, %v527
  %v534 = vadd.f32 %v511, %v527
  %v535 = vadd.f32 %v516, %v527
  %v536 = vadd.f32 %v519, %v527
  %vm537 = vcmask 64512
  %538 = vst.msk [vmem:[%s6] sm:$0xff] %vm537, %v529
  %539 = vst.msk [vmem:[%s6 + $0x8] sm:$0xff] %vm537, %v530
  %540 = vst.msk [vmem:[%s6 + $0x10] sm:$0xff] %vm537, %v531
  %541 = vst.msk [vmem:[%s6 + $0x18] sm:$0xff] %vm537, %v532
  %542 = vst.msk [vmem:[%s6 + $0x20] sm:$0xff] %vm537, %v533
  %543 = vst.msk [vmem:[%s6 + $0x28] sm:$0xff] %vm537, %v534
  %544 = vst.msk [vmem:[%s6 + $0x30] sm:$0xff] %vm537, %v535
  %545 = vst.msk [vmem:[%s6 + $0x38] sm:$0xff] %vm537, %v536
  // Predicated region
  $region26: #{tpu_custom_call.1} parent=0 // pred_check
    _
  $region27: #{tpu_custom_call.1} parent=0 // pred_check_branch
    %547 = sbr.rel (0) target = $region29
  $region28: #{tpu_custom_call.1} parent=0 // pred_region
    _
  $region29: #{tpu_custom_call.1} parent=0 // pred_fallthru
    _
  // Predicated region
  $region30: #{tpu_custom_call.1} parent=0 // pred_check
    _
  $region31: #{tpu_custom_call.1} parent=0 // pred_check_branch
    %549 = sbr.rel (0) target = $region33
  $region32: #{tpu_custom_call.1} parent=0 // pred_region
    _
  $region33: #{tpu_custom_call.1} parent=0 // pred_fallthru
    _

</llo_original>
